<compile_context>
chip_gen: v7x
topology: tpu7x:2x2x1
jax: 0.10.0
libtpu: 0.0.40
codegen_flags: <defaults>
</compile_context>

<pallas_src>
import functools

import jax
import jax.numpy as jnp
from jax import lax
from jax.experimental import pallas as pl
from jax.experimental.pallas import tpu as pltpu


def _round_up(x, m):
    return (x + m - 1) // m * m


# ----------------------------- fused Pallas kernel --------------------------

def _fused_stem_pool_fc_kernel(p_ref, cw_ref, cb_ref, fw_ref, fb_ref,
                               o_ref, acc_ref, *, s_valid):
    """One grid step: conv-matmul + bias + ReLU over a (tile_b, tile_s) patch
    slab, accumulate per-batch spatial sums; fc head on the last spatial step.

    p_ref  : (tile_b, tile_s, Kp)   bf16 im2col patches (K padded 27->32 only)
    cw_ref : (Kp, Cp)               bf16 conv weights
    cb_ref : (1, Cp)                f32 conv bias
    fw_ref : (Cp, NCp)              bf16 fc weights, pre-scaled by 1/(Ho*Wo)
    fb_ref : (1, NCp)               f32 fc bias (zero-padded classes)
    o_ref  : (1, tile_b, NCp)       f32 logits (padded classes, lane-dense store)
    acc_ref: (tile_b, Cp)           f32 per-batch pooled-sum accumulator
    """
    s = pl.program_id(1)

    @pl.when(s == 0)
    def _init():
        acc_ref[...] = jnp.zeros_like(acc_ref)

    tb, ts, kp = p_ref.shape
    cp = cw_ref.shape[1]

    # conv-as-matmul on the MXU: bf16 inputs, f32 accumulation.
    patches = p_ref[...].reshape(tb * ts, kp)          # free view (ts % 16 == 0)
    feat = jnp.dot(patches, cw_ref[...], preferred_element_type=jnp.float32)
    feat = jnp.maximum(feat + cb_ref[...], 0.0)        # conv bias + ReLU
    feat = feat.reshape(tb, ts, cp)

    if s_valid is not None:
        # Spatial dim was zero-padded; padded patch rows would contribute
        # relu(bias) to the pooled sum, so mask them out.  Compile-time branch.
        row = s * ts + lax.broadcasted_iota(jnp.int32, (tb, ts, cp), 1)
        feat = jnp.where(row < s_valid, feat, 0.0)

    # per-batch spatial sum: one sublane-group reduction (XLU), channels stay
    # lane-dense on the lane axis.
    acc_ref[...] += jnp.sum(feat, axis=1)

    @pl.when(s == pl.num_programs(1) - 1)
    def _finalize():
        # fc weights already carry the 1/(Ho*Wo) pooling scale; bf16 x bf16
        # keeps the head matmul on the fast MXU path (f32 accumulate).
        logits = jnp.dot(acc_ref[...].astype(jnp.bfloat16), fw_ref[...],
                         preferred_element_type=jnp.float32) + fb_ref[...]
        o_ref[...] = logits[None].astype(o_ref.dtype)


# ------------------------------ JAX glue -----------------------------------

def _im2col(x, kh, kw, stride, pad):
    # x: (B, Cin, H, W) -> (B*Ho*Wo, Cin*kh*kw); K ordered (Cin, kh, kw) to
    # match PyTorch conv weight layout (Cout, Cin, kh, kw).
    B, C, H, W = x.shape
    xp = jnp.pad(x, ((0, 0), (0, 0), (pad, pad), (pad, pad)))
    Ho = (H + 2 * pad - kh) // stride + 1
    Wo = (W + 2 * pad - kw) // stride + 1
    cols = []
    for i in range(kh):
        for j in range(kw):
            cols.append(xp[:, :, i:i + stride * Ho:stride, j:j + stride * Wo:stride])
    p = jnp.stack(cols, axis=0).reshape(kh, kw, B, C, Ho, Wo)
    p = p.transpose(2, 4, 5, 3, 0, 1)                  # (B, Ho, Wo, C, kh, kw)
    return p.reshape(B * Ho * Wo, C * kh * kw), Ho, Wo


def _pick_tile_b(B):
    # Cap tile_b at 8 (bounds per-step VMEM footprint) and prefer >= 2 batch
    # tiles whenever B >= 2 so the "parallel" axis shards across v7x's two TCs.
    cap = min(8, max(1, B // 2))
    for t in range(cap, 0, -1):
        if B % t == 0:
            return t
    return 1


class PallasModel:
    """Stand-in for Model(model_name, num_classes): conv stem + avgpool + fc."""

    def __init__(self, in_chans, n_features, num_classes, key):
        k1, k2, k3, k4 = jax.random.split(key, 4)
        kh = kw = 3
        # backbone stand-in conv (Cout, Cin, kh, kw) like PyTorch
        self.conv_w = 0.1 * jax.random.normal(
            k1, (n_features, in_chans, kh, kw), jnp.float32)
        self.conv_b = 0.1 * jax.random.normal(k2, (n_features,), jnp.float32)
        # head: nn.Linear(n_features, num_classes) -> weight (num_classes, n_features)
        self.fc_w = 0.1 * jax.random.normal(
            k3, (num_classes, n_features), jnp.float32)
        self.fc_b = 0.1 * jax.random.normal(k4, (num_classes,), jnp.float32)
        self.kh, self.kw, self.stride, self.pad = kh, kw, 2, 1
        self.in_chans = in_chans
        self.n_features = n_features
        self.num_classes = num_classes

    def __call__(self, x):
        B = x.shape[0]
        K = self.in_chans * self.kh * self.kw
        patches, Ho, Wo = _im2col(x, self.kh, self.kw, self.stride, self.pad)
        S = Ho * Wo

        # ---- pad only where it buys something ----
        Kp = _round_up(K, 8)                       # 27 -> 32, NOT 128 (patch DMA stays dense)
        Cp = (self.n_features if self.n_features <= 128
              else _round_up(self.n_features, 128))
        NCp = _round_up(self.num_classes, 128)     # lane-dense (unmasked) logit store

        # ---- tile sizes from an explicit VMEM budget ----
        tile_b = _pick_tile_b(B)
        # VMEM block footprints use lane/sublane-padded sizes ((16,128) bf16 tiles).
        Kl, Cl, Nl = (_round_up(d, 128) for d in (Kp, Cp, NCp))
        row_bytes = tile_b * (2 * Kl * 2 + Cl * 4)   # 2x bf16 patch bufs + f32 feat per row
        budget = 24 * 1024 * 1024                    # per-step target, safe on v5e/v6e/v7x
        S16 = _round_up(S, 16)                       # bf16 sublane packing
        tile_s = min(512, S16, max(16, (budget // row_bytes) // 16 * 16))
        Sp = _round_up(S, tile_s)                    # pad spatial, mask in-kernel
        grid = (B // tile_b, Sp // tile_s)

        # ---- operand prep ----
        p3 = patches.reshape(B, S, K)
        p3 = jnp.pad(p3, ((0, 0), (0, Sp - S), (0, Kp - K))).astype(jnp.bfloat16)

        cw = self.conv_w.reshape(self.n_features, K).T                   # (K, Cout)
        cw = jnp.pad(cw, ((0, Kp - K),
                          (0, Cp - self.n_features))).astype(jnp.bfloat16)
        cb = jnp.pad(self.conv_b,
                     (0, Cp - self.n_features)).reshape(1, Cp).astype(jnp.float32)

        fw = jnp.pad(self.fc_w.T,                                        # (Cout, classes)
                     ((0, Cp - self.n_features), (0, NCp - self.num_classes)))
        fw = (fw / float(S)).astype(jnp.bfloat16)    # fold AdaptiveAvgPool2d mean
        fb = jnp.pad(self.fc_b,
                     (0, NCp - self.num_classes)).reshape(1, NCp).astype(jnp.float32)

        # Explicit VMEM limit from the actual per-step footprint; clamp under
        # v7x's 64 MiB physical VMEM (v5e/v6e have 128 MiB so this is safe there).
        vmem_bytes = (2 * tile_b * tile_s * Kl * 2            # patch double-buffer (bf16)
                      + tile_b * tile_s * Cl * 4              # f32 feat intermediate
                      + 2 * (Kl * Cl * 2 + 8 * Cl * 4
                             + Cl * Nl * 2 + 8 * Nl * 4)      # resident weights/biases
                      + 2 * 8 * Nl * 4                        # output block
                      + 8 * Cl * 4)                           # acc scratch
        vmem_limit = int(min(60 * 2**20, max(32 * 2**20, 2 * vmem_bytes)))

        kernel = functools.partial(_fused_stem_pool_fc_kernel,
                                   s_valid=(S if Sp != S else None))

        nb = B // tile_b
        out_padded = pl.pallas_call(
            kernel,
            # 3-D output so the block's last two dims equal the full array dims
            # -> any tile_b is legal under the (8,128) rule.
            out_shape=jax.ShapeDtypeStruct((nb, tile_b, NCp), jnp.float32),
            grid_spec=pltpu.PrefetchScalarGridSpec(
                num_scalar_prefetch=0,
                grid=grid,
                in_specs=[
                    pl.BlockSpec((tile_b, tile_s, Kp), lambda b, s: (b, s, 0)),
                    pl.BlockSpec((Kp, Cp), lambda b, s: (0, 0)),
                    pl.BlockSpec((1, Cp), lambda b, s: (0, 0)),
                    pl.BlockSpec((Cp, NCp), lambda b, s: (0, 0)),
                    pl.BlockSpec((1, NCp), lambda b, s: (0, 0)),
                ],
                out_specs=pl.BlockSpec((1, tile_b, NCp), lambda b, s: (b, 0, 0)),
                scratch_shapes=[pltpu.VMEM((tile_b, Cp), jnp.float32)],
            ),
            compiler_params=pltpu.CompilerParams(
                dimension_semantics=("parallel", "arbitrary"),
                vmem_limit_bytes=vmem_limit),
        )(p3, cw, cb, fw, fb)

        return out_padded.reshape(B, NCp)[:, :self.num_classes]


if __name__ == "__main__":
    key = jax.random.PRNGKey(0)
    k_in, k_params = jax.random.split(key)

    B, Cin, H, W = 2, 3, 16, 16
    n_features, num_classes = 32, 10

    x = jax.random.normal(k_in, (B, Cin, H, W), jnp.float32)
    model = PallasModel(Cin, n_features, num_classes, k_params)

    out = jax.block_until_ready(model(x))
    assert out.shape == (B, num_classes), out.shape

    # pure-JAX f32 reference of the same forward pass
    patches, Ho, Wo = _im2col(x, 3, 3, 2, 1)
    feat_ref = jnp.maximum(
        patches @ model.conv_w.reshape(n_features, -1).T + model.conv_b, 0.0)
    pooled_ref = feat_ref.reshape(B, Ho * Wo, n_features).mean(axis=1)
    out_ref = pooled_ref @ model.fc_w.T + model.fc_b
    # bf16 MXU inputs (patches/weights/pooled acc) with f32 accumulation:
    # deliberate precision tradeoff, tolerance loosened accordingly.
    assert jnp.allclose(out, out_ref, atol=2e-2, rtol=2e-2), (
        float(jnp.max(jnp.abs(out - out_ref))))

    print("KERNEL_OK")
</pallas_src>

<mosaic_0001>
module attributes {stable_mosaic.version = 11 : i64} {
  func.func @_fused_stem_pool_fc_kernel(%arg0: i32, %arg1: i32, %arg2: memref<1x64x32xbf16, #tpu.memory_space<vmem>>, %arg3: memref<32x32xbf16, #tpu.memory_space<vmem>>, %arg4: memref<1x32xf32, #tpu.memory_space<vmem>>, %arg5: memref<32x128xbf16, #tpu.memory_space<vmem>>, %arg6: memref<1x128xf32, #tpu.memory_space<vmem>>, %arg7: memref<1x1x128xf32, #tpu.memory_space<vmem>>, %arg8: memref<1x32xf32, #tpu.memory_space<vmem>>) attributes {dimension_semantics = [#tpu.dimension_semantics<parallel>, #tpu.dimension_semantics<arbitrary>], iteration_bounds = array<i64: 2, 1>, scalar_prefetch = 0 : i64, scratch_operands = 1 : i64, tpu.core_type = #tpu.core_type<tc>, window_params = [{transform_indices = @transform_0, window_bounds = array<i64: 1, 64, 32>}, {pipeline_mode = #tpu.pipeline_mode<synchronous>, transform_indices = @transform_1, window_bounds = array<i64: 32, 32>}, {pipeline_mode = #tpu.pipeline_mode<synchronous>, transform_indices = @transform_2, window_bounds = array<i64: 1, 32>}, {pipeline_mode = #tpu.pipeline_mode<synchronous>, transform_indices = @transform_3, window_bounds = array<i64: 32, 128>}, {pipeline_mode = #tpu.pipeline_mode<synchronous>, transform_indices = @transform_4, window_bounds = array<i64: 1, 128>}, {transform_indices = @transform_5, window_bounds = array<i64: 1, 1, 128>}]} {
    %c0_i32 = arith.constant 0 : i32
    %0 = arith.cmpi eq, %arg1, %c0_i32 : i32
    %1 = arith.extui %0 : i1 to i32
    %c0_i32_0 = arith.constant 0 : i32
    %2 = arith.cmpi ne, %1, %c0_i32_0 : i32
    scf.if %2 {
      %cst_15 = arith.constant 0.000000e+00 : f32
      %20 = vector.broadcast %cst_15 : f32 to vector<1x32xf32>
      %c0_16 = arith.constant 0 : index
      %c0_17 = arith.constant 0 : index
      %21 = vector.load %arg8[%c0_16, %c0_17] : memref<1x32xf32, #tpu.memory_space<vmem>>, vector<1x32xf32>
      tpu.vector_store %arg8[%c0_16, %c0_17], %20 {strides = array<i32>} : memref<1x32xf32, #tpu.memory_space<vmem>>, vector<1x32xf32>,
    } else {
    }
    %c0 = arith.constant 0 : index
    %c0_1 = arith.constant 0 : index
    %c0_2 = arith.constant 0 : index
    %3 = vector.load %arg2[%c0, %c0_1, %c0_2] : memref<1x64x32xbf16, #tpu.memory_space<vmem>>, vector<1x64x32xbf16>
    %4 = vector.shape_cast %3 : vector<1x64x32xbf16> to vector<64x32xbf16>
    %c0_3 = arith.constant 0 : index
    %c0_4 = arith.constant 0 : index
    %5 = vector.load %arg3[%c0_3, %c0_4] : memref<32x32xbf16, #tpu.memory_space<vmem>>, vector<32x32xbf16>
    %cst = arith.constant dense<0.000000e+00> : vector<64x32xf32>
    %6 = tpu.matmul %4, %5, %cst {dimension_numbers = #tpu.dot_dimension_numbers<[1], [0], [0], [1], [0, 0, 1, 1], [], []>} : vector<64x32xbf16>, vector<32x32xbf16>, vector<64x32xf32> -> vector<64x32xf32>
    %c0_5 = arith.constant 0 : index
    %c0_6 = arith.constant 0 : index
    %7 = vector.load %arg4[%c0_5, %c0_6] : memref<1x32xf32, #tpu.memory_space<vmem>>, vector<1x32xf32>
    %8 = vector.broadcast %7 : vector<1x32xf32> to vector<64x32xf32>
    %9 = arith.addf %6, %8 : vector<64x32xf32>
    %cst_7 = arith.constant 0.000000e+00 : f32
    %10 = vector.broadcast %cst_7 : f32 to vector<64x32xf32>
    %11 = arith.maximumf %9, %10 : vector<64x32xf32>
    %12 = vector.shape_cast %11 : vector<64x32xf32> to vector<1x64x32xf32>
    %c0_8 = arith.constant 0 : index
    %c0_9 = arith.constant 0 : index
    %13 = vector.load %arg8[%c0_8, %c0_9] : memref<1x32xf32, #tpu.memory_space<vmem>>, vector<1x32xf32>
    %cst_10 = arith.constant dense<0.000000e+00> : vector<1x32xf32>
    %14 = vector.multi_reduction <add>, %12, %cst_10 [1] : vector<1x64x32xf32> to vector<1x32xf32>
    %15 = arith.addf %13, %14 : vector<1x32xf32>
    %c0_11 = arith.constant 0 : index
    %c0_12 = arith.constant 0 : index
    %16 = vector.load %arg8[%c0_11, %c0_12] : memref<1x32xf32, #tpu.memory_space<vmem>>, vector<1x32xf32>
    tpu.vector_store %arg8[%c0_11, %c0_12], %15 {strides = array<i32>} : memref<1x32xf32, #tpu.memory_space<vmem>>, vector<1x32xf32>,
    %c0_i32_13 = arith.constant 0 : i32
    %17 = arith.cmpi eq, %arg1, %c0_i32_13 : i32
    %18 = arith.extui %17 : i1 to i32
    %c0_i32_14 = arith.constant 0 : i32
    %19 = arith.cmpi ne, %18, %c0_i32_14 : i32
    scf.if %19 {
      %c0_15 = arith.constant 0 : index
      %c0_16 = arith.constant 0 : index
      %20 = vector.load %arg8[%c0_15, %c0_16] : memref<1x32xf32, #tpu.memory_space<vmem>>, vector<1x32xf32>
      %21 = arith.truncf %20 : vector<1x32xf32> to vector<1x32xbf16>
      %c0_17 = arith.constant 0 : index
      %c0_18 = arith.constant 0 : index
      %22 = vector.load %arg5[%c0_17, %c0_18] : memref<32x128xbf16, #tpu.memory_space<vmem>>, vector<32x128xbf16>
      %cst_19 = arith.constant dense<0.000000e+00> : vector<1x128xf32>
      %23 = tpu.matmul %21, %22, %cst_19 {dimension_numbers = #tpu.dot_dimension_numbers<[1], [0], [0], [1], [0, 0, 1, 1], [], []>} : vector<1x32xbf16>, vector<32x128xbf16>, vector<1x128xf32> -> vector<1x128xf32>
      %c0_20 = arith.constant 0 : index
      %c0_21 = arith.constant 0 : index
      %24 = vector.load %arg6[%c0_20, %c0_21] : memref<1x128xf32, #tpu.memory_space<vmem>>, vector<1x128xf32>
      %25 = arith.addf %23, %24 : vector<1x128xf32>
      %26 = vector.shape_cast %25 : vector<1x128xf32> to vector<1x1x128xf32>
      %c0_22 = arith.constant 0 : index
      %c0_23 = arith.constant 0 : index
      %c0_24 = arith.constant 0 : index
      %27 = vector.load %arg7[%c0_22, %c0_23, %c0_24] : memref<1x1x128xf32, #tpu.memory_space<vmem>>, vector<1x1x128xf32>
      tpu.vector_store %arg7[%c0_22, %c0_23, %c0_24], %26 {strides = array<i32>} : memref<1x1x128xf32, #tpu.memory_space<vmem>>, vector<1x1x128xf32>,
    } else {
    }
    return
  }
  func.func @transform_0(%arg0: i32, %arg1: i32) -> (i32, i32, i32) {
    %c0_i32 = arith.constant 0 : i32
    %c0_i32_0 = arith.constant 0 : i32
    return %arg0, %arg1, %c0_i32 : i32, i32, i32
  }
  func.func @transform_1(%arg0: i32, %arg1: i32) -> (i32, i32) {
    %c0_i32 = arith.constant 0 : i32
    %c0_i32_0 = arith.constant 0 : i32
    %c0_i32_1 = arith.constant 0 : i32
    return %c0_i32, %c0_i32_0 : i32, i32
  }
  func.func @transform_2(%arg0: i32, %arg1: i32) -> (i32, i32) {
    %c0_i32 = arith.constant 0 : i32
    %c0_i32_0 = arith.constant 0 : i32
    %c0_i32_1 = arith.constant 0 : i32
    return %c0_i32, %c0_i32_0 : i32, i32
  }
  func.func @transform_3(%arg0: i32, %arg1: i32) -> (i32, i32) {
    %c0_i32 = arith.constant 0 : i32
    %c0_i32_0 = arith.constant 0 : i32
    %c0_i32_1 = arith.constant 0 : i32
    return %c0_i32, %c0_i32_0 : i32, i32
  }
  func.func @transform_4(%arg0: i32, %arg1: i32) -> (i32, i32) {
    %c0_i32 = arith.constant 0 : i32
    %c0_i32_0 = arith.constant 0 : i32
    %c0_i32_1 = arith.constant 0 : i32
    return %c0_i32, %c0_i32_0 : i32, i32
  }
  func.func @transform_5(%arg0: i32, %arg1: i32) -> (i32, i32, i32) {
    %c0_i32 = arith.constant 0 : i32
    %c0_i32_0 = arith.constant 0 : i32
    %c0_i32_1 = arith.constant 0 : i32
    return %arg0, %c0_i32, %c0_i32_0 : i32, i32, i32
  }
}

</mosaic_0001>

<llo_original>
// kernel: tpu_custom_call.1
$region0: #{tpu_custom_call.1}
  #allocation0 [shape = 'u32[]', space=smem, size = 0x4, offset = 0x4, fixed_abs, tag = 'smem constant byte address 0x4 - core index']
  #allocation1 [shape = 'u32[144,128]{1,0:T(1,128)}', space=vmem, size = 0x12000, scoped, tag = 'internal scratch']
  #allocation2 [shape = 'f32[1,32]{1,0:T(1,128)}', space=vmem, size = 0x200, scoped, tag = 'scratch operand']
  %s0 = inlined_call_operand.vmem [shape: bf16[2,64,32], index: 0, kind: input, shape index: {}]
  %s1 = inlined_call_operand.vmem [shape: bf16[32,32], index: 1, kind: input, shape index: {}]
  %s2 = inlined_call_operand.vmem [shape: f32[1,32], index: 2, kind: input, shape index: {}]
  %s3 = inlined_call_operand.vmem [shape: bf16[32,128], index: 3, kind: input, shape index: {}]
  %s4 = inlined_call_operand.vmem [shape: f32[1,128], index: 4, kind: input, shape index: {}]
  %s5 = inlined_call_operand.hbm [shape: f32[2,1,128], index: 5, kind: output, shape index: {}]
  %s6 = sld [smem:[#allocation0]]
  $region61: #{tpu_custom_call.1} parent=0
    _
  %s8 = ssub.s32 1, %s6
  %s9 = scalar_select 0, %s8, %s6
  $region1: #{tpu_custom_call.1} parent=0
    #allocation3 [shape = 'u8[1024]{0}', space=vmem, size = 0x400, scoped, tag = 'output window, operand 0']
    #allocation4 [shape = 's32[2]{0}', space=sflag, size = 0x8, scoped, tag = 'scoped memory for tpu_custom_call.1']
    %10 = vsyncpa [#allocation4], 0
    %s11 = scalar_lea.sflag [#allocation4], 1
    %12 = vsyncpa %s11, 0
    loop: start=0, step=1, limit=4
    $region2: #{tpu_custom_call.1} parent=1 // loop_pre_header
      _
    $region3: #{tpu_custom_call.1} parent=1 // loop_header
      %s14 = sphi 0, %s18
      %p15 = scmp.ge.s32.totalorder %s14, 4
      %s21 = sphi 0, %s33
      %s22 = sphi 0, %s29
      %s23 = sphi 0, %s21
      %s24 = sphi 0, %s22
      %s25 = sphi 0, %s23
      %s26 = sphi 0, %s24
      %s38 = sphi 0, %s40
      %s41 = sphi 0, %s38
      %s42 = sphi 0, %s41
      %s58 = sphi 0, %s42
      %s62 = sphi 0, %s62
      %s64 = sphi 0, %s62
      %s65 = sphi 0, %s64
      %s79 = sphi 0, %s65
      %s83 = sphi 0, %s83
      %s85 = sphi 0, %s83
      %s86 = sphi 0, %s85
      %s100 = sphi 0, %s86
      %s104 = sphi 0, %s104
      %s106 = sphi 0, %s104
      %s107 = sphi 0, %s106
      %s121 = sphi 0, %s107
      %s125 = sphi 0, %s125
      %s127 = sphi 0, %s125
      %s128 = sphi 0, %s127
      %s142 = sphi 0, %s128
      %s148 = sphi 0, %s150
      %s151 = sphi 0, %s148
      %s152 = sphi 0, %s151
      %s168 = sphi 0, %s152
    $region4: #{tpu_custom_call.1} parent=1 // loop_header_branch
      %17 = sbr.rel (%p15) target = $region8
    $region5: #{tpu_custom_call.1} parent=1 // loop_body
      %s19 = ssub.s32 %s14, 1
      %s20 = ssub.s32 %s14, 2
      %s27 = sadd.s32 1, %s22
      %p28 = scmp.ge.s32.totalorder %s27, 1
      %s29 = scalar_select %p28, 0, %s27
      %s30 = sadd.s32 1, %s21
      %s31 = scalar_select %p28, %s30, %s21
      %p32 = scmp.ge.s32.totalorder %s31, 2
      %s33 = scalar_select %p32, 0, %s31
      %s34 = ssub.s32 %s21, %s33
      %s35 = ssub.s32 %s22, %s29
      %s36 = sor.u32 %s34, %s35
      %p37 = scmp.eq.s32.totalorder %s36, 0
      %s39 = sadd.s32 %s38, 1
      %s40 = scalar_select %p37, %s38, %s39
      %p43 = pneg %p37
      %p44 = scmp.eq.s32.totalorder %s14, 1
      %p45 = por %p43, %p44
      %p46 = scmp.ne.s32.totalorder %s38, %s41
      %p47 = scmp.eq.s32.totalorder %s14, 0
      %p48 = por %p46, %p47
      %p49 = scmp.ne.s32.totalorder %s38, %s41
      %p50 = scmp.eq.s32.totalorder %s19, 1
      %p51 = por %p49, %p50
      %p52 = scmp.ne.s32.totalorder %s41, %s42
      %p53 = scmp.eq.s32.totalorder %s19, 0
      %p54 = por %p52, %p53
      %p55 = scmp.ne.s32.totalorder %s41, %s42
      %p56 = scmp.eq.s32.totalorder %s20, 1
      %p57 = por %p55, %p56
      %p59 = scmp.ne.s32.totalorder %s42, %s58
      %p60 = scmp.eq.s32.totalorder %s20, 0
      %p61 = por %p59, %p60
      %s63 = sadd.s32 %s62, 1
      %p66 = scmp.eq.s32.totalorder %s14, 1
      %p67 = scmp.ne.s32.totalorder %s62, %s64
      %p68 = scmp.eq.s32.totalorder %s14, 0
      %p69 = por %p67, %p68
      %p70 = scmp.ne.s32.totalorder %s62, %s64
      %p71 = scmp.eq.s32.totalorder %s19, 1
      %p72 = por %p70, %p71
      %p73 = scmp.ne.s32.totalorder %s64, %s65
      %p74 = scmp.eq.s32.totalorder %s19, 0
      %p75 = por %p73, %p74
      %p76 = scmp.ne.s32.totalorder %s64, %s65
      %p77 = scmp.eq.s32.totalorder %s20, 1
      %p78 = por %p76, %p77
      %p80 = scmp.ne.s32.totalorder %s65, %s79
      %p81 = scmp.eq.s32.totalorder %s20, 0
      %p82 = por %p80, %p81
      %s84 = sadd.s32 %s83, 1
      %p87 = scmp.eq.s32.totalorder %s14, 1
      %p88 = scmp.ne.s32.totalorder %s83, %s85
      %p89 = scmp.eq.s32.totalorder %s14, 0
      %p90 = por %p88, %p89
      %p91 = scmp.ne.s32.totalorder %s83, %s85
      %p92 = scmp.eq.s32.totalorder %s19, 1
      %p93 = por %p91, %p92
      %p94 = scmp.ne.s32.totalorder %s85, %s86
      %p95 = scmp.eq.s32.totalorder %s19, 0
      %p96 = por %p94, %p95
      %p97 = scmp.ne.s32.totalorder %s85, %s86
      %p98 = scmp.eq.s32.totalorder %s20, 1
      %p99 = por %p97, %p98
      %p101 = scmp.ne.s32.totalorder %s86, %s100
      %p102 = scmp.eq.s32.totalorder %s20, 0
      %p103 = por %p101, %p102
      %s105 = sadd.s32 %s104, 1
      %p108 = scmp.eq.s32.totalorder %s14, 1
      %p109 = scmp.ne.s32.totalorder %s104, %s106
      %p110 = scmp.eq.s32.totalorder %s14, 0
      %p111 = por %p109, %p110
      %p112 = scmp.ne.s32.totalorder %s104, %s106
      %p113 = scmp.eq.s32.totalorder %s19, 1
      %p114 = por %p112, %p113
      %p115 = scmp.ne.s32.totalorder %s106, %s107
      %p116 = scmp.eq.s32.totalorder %s19, 0
      %p117 = por %p115, %p116
      %p118 = scmp.ne.s32.totalorder %s106, %s107
      %p119 = scmp.eq.s32.totalorder %s20, 1
      %p120 = por %p118, %p119
      %p122 = scmp.ne.s32.totalorder %s107, %s121
      %p123 = scmp.eq.s32.totalorder %s20, 0
      %p124 = por %p122, %p123
      %s126 = sadd.s32 %s125, 1
      %p129 = scmp.eq.s32.totalorder %s14, 1
      %p130 = scmp.ne.s32.totalorder %s125, %s127
      %p131 = scmp.eq.s32.totalorder %s14, 0
      %p132 = por %p130, %p131
      %p133 = scmp.ne.s32.totalorder %s125, %s127
      %p134 = scmp.eq.s32.totalorder %s19, 1
      %p135 = por %p133, %p134
      %p136 = scmp.ne.s32.totalorder %s127, %s128
      %p137 = scmp.eq.s32.totalorder %s19, 0
      %p138 = por %p136, %p137
      %p139 = scmp.ne.s32.totalorder %s127, %s128
      %p140 = scmp.eq.s32.totalorder %s20, 1
      %p141 = por %p139, %p140
      %p143 = scmp.ne.s32.totalorder %s128, %s142
      %p144 = scmp.eq.s32.totalorder %s20, 0
      %p145 = por %p143, %p144
      %s146 = ssub.s32 %s21, %s33
      %p147 = scmp.eq.s32.totalorder %s146, 0
      %s149 = sadd.s32 %s148, 1
      %s150 = scalar_select %p147, %s148, %s149
      %p153 = pneg %p147
      %p154 = scmp.eq.s32.totalorder %s14, 1
      %p155 = por %p153, %p154
      %p156 = scmp.ne.s32.totalorder %s148, %s151
      %p157 = scmp.eq.s32.totalorder %s14, 0
      %p158 = por %p156, %p157
      %p159 = scmp.ne.s32.totalorder %s148, %s151
      %p160 = scmp.eq.s32.totalorder %s19, 1
      %p161 = por %p159, %p160
      %p162 = scmp.ne.s32.totalorder %s151, %s152
      %p163 = scmp.eq.s32.totalorder %s19, 0
      %p164 = por %p162, %p163
      %p165 = scmp.ne.s32.totalorder %s151, %s152
      %p166 = scmp.eq.s32.totalorder %s20, 1
      %p167 = por %p165, %p166
      %p169 = scmp.ne.s32.totalorder %s152, %s168
      %p170 = scmp.eq.s32.totalorder %s20, 0
      %p171 = por %p169, %p170
      %p172 = scmp.le.s32.totalorder 1, %s14
      %p173 = scmp.lt.s32.totalorder %s14, 3
      %p174 = pnand %p172, %p173
      %p175 = pneg %p174
      // Predicated region
      $region9: #{tpu_custom_call.1} parent=5 // pred_check
        _
      $region10: #{tpu_custom_call.1} parent=5 // pred_check_branch
        %177 = sbr.rel (%p174) target = $region12
      $region11: #{tpu_custom_call.1} parent=5 // pred_region
        %s178 = ssub.s32 %s14, 1
        // Predicated region
        $region13: #{tpu_custom_call.1} parent=11 // pred_check
          %p179 = pneg %p75
        $region14: #{tpu_custom_call.1} parent=11 // pred_check_branch
          %181 = sbr.rel (%p179) target = $region16
        $region15: #{tpu_custom_call.1} parent=11 // pred_region
          _
        $region16: #{tpu_custom_call.1} parent=11 // pred_fallthru
          _
        // Predicated region
        $region17: #{tpu_custom_call.1} parent=11 // pred_check
          %p182 = pneg %p96
        $region18: #{tpu_custom_call.1} parent=11 // pred_check_branch
          %184 = sbr.rel (%p182) target = $region20
        $region19: #{tpu_custom_call.1} parent=11 // pred_region
          _
        $region20: #{tpu_custom_call.1} parent=11 // pred_fallthru
          _
        // Predicated region
        $region21: #{tpu_custom_call.1} parent=11 // pred_check
          %p185 = pneg %p117
        $region22: #{tpu_custom_call.1} parent=11 // pred_check_branch
          %187 = sbr.rel (%p185) target = $region24
        $region23: #{tpu_custom_call.1} parent=11 // pred_region
          _
        $region24: #{tpu_custom_call.1} parent=11 // pred_fallthru
          _
        // Predicated region
        $region25: #{tpu_custom_call.1} parent=11 // pred_check
          %p188 = pneg %p138
        $region26: #{tpu_custom_call.1} parent=11 // pred_check_branch
          %190 = sbr.rel (%p188) target = $region28
        $region27: #{tpu_custom_call.1} parent=11 // pred_region
          _
        $region28: #{tpu_custom_call.1} parent=11 // pred_fallthru
          _
      $region12: #{tpu_custom_call.1} parent=5 // pred_fallthru
        _
      %p191 = scmp.lt.s32.totalorder %s14, 2
      // Predicated region
      $region29: #{tpu_custom_call.1} parent=5 // pred_check
        %p192 = pneg %p191
      $region30: #{tpu_custom_call.1} parent=5 // pred_check_branch
        %194 = sbr.rel (%p192) target = $region32
      $region31: #{tpu_custom_call.1} parent=5 // pred_region
        // Predicated region
        $region33: #{tpu_custom_call.1} parent=31 // pred_check
          %p195 = pneg %p48
        $region34: #{tpu_custom_call.1} parent=31 // pred_check_branch
          %197 = sbr.rel (%p195) target = $region36
        $region35: #{tpu_custom_call.1} parent=31 // pred_region
          %s198 = smul.u32 8, %s22
          %p199 = scmp.lt.s32.totalorder %s21, 1
          %s200 = scalar_select %p199, %s21, 1
          %p201 = scmp.lt.s32.totalorder %s198, 7
          %s202 = scalar_select %p201, %s198, 7
          %s203 = smul.addr %s200, 8
          %s204 = sadd.s32 %s202, %s203
          %s205 = smul.addr %s204, 4
          %s206 = scalar_lea.vmem %s0, %s205
          %s207 = smul.u32 8, %s22
        $region36: #{tpu_custom_call.1} parent=31 // pred_fallthru
          _
      $region32: #{tpu_custom_call.1} parent=5 // pred_fallthru
        _
      %p208 = scmp.le.s32.totalorder 1, %s14
      %p209 = scmp.lt.s32.totalorder %s14, 3
      %p210 = pnand %p208, %p209
      %p211 = pneg %p210
      // Predicated region
      $region37: #{tpu_custom_call.1} parent=5 // pred_check
        _
      $region38: #{tpu_custom_call.1} parent=5 // pred_check_branch
        %213 = sbr.rel (%p210) target = $region40
      $region39: #{tpu_custom_call.1} parent=5 // pred_region
        %s214 = ssub.s32 %s14, 1
        %s215 = smul.u32 8, %s24
        %p216 = scmp.lt.s32.totalorder %s23, 1
        %s217 = scalar_select %p216, %s23, 1
        %p218 = scmp.lt.s32.totalorder %s215, 7
        %s219 = scalar_select %p218, %s215, 7
        %s220 = smul.addr %s217, 8
        %s221 = sadd.s32 %s219, %s220
        %s222 = smul.addr %s221, 4
        %s223 = scalar_lea.vmem %s0, %s222
        %p224 = pneg %p54
        %p225 = pneg %p51
        %p226 = pneg %p75
        %p227 = pneg %p72
        %p228 = pneg %p96
        %p229 = pneg %p93
        %p230 = pneg %p117
        %p231 = pneg %p114
        %p232 = pneg %p138
        %p233 = pneg %p135
        %p234 = pneg %p164
        %p235 = pneg %p161
        %s236 = sand.u32 %s151, 1
        %s237 = scalar_lea.sflag [#allocation4], %s236
        %s238 = sand.u32 %s151, 1
        %s239 = scalar_lea.vmem [#allocation3], %s238
        %s240 = smul.u32 8, %s24
        %p241 = scmp.lt.s32.totalorder %s23, 1
        %s242 = scalar_select %p241, %s23, 1
        %p243 = scmp.lt.s32.totalorder %s240, 7
        %s244 = scalar_select %p243, %s240, 7
        %s245 = smul.addr %s242, 8
        %s246 = sadd.s32 %s244, %s245
        %s247 = smul.addr %s246, 4
        %s248 = scalar_lea.vmem %s0, %s247
        %s249 = smul.u32 8, %s24
        %p251 = scmp.eq.s32.totalorder %s24, 0
        // Predicated region
        $region41: #{tpu_custom_call.1} parent=39 // pred_check
          %p252 = pneg %p251
        $region42: #{tpu_custom_call.1} parent=39 // pred_check_branch
          %254 = sbr.rel (%p252) target = $region44
        $region43: #{tpu_custom_call.1} parent=39 // pred_region
          %vm255 = vcmask 253952
          %256 = vst.msk [vmem:[#allocation2] sm:$0x1] %vm255, 0.0
        $region44: #{tpu_custom_call.1} parent=39 // pred_fallthru
          _
        %v257 = vld [vmem:[%s248] sm:$0xf]
        %v258 = vld [vmem:[%s248 + $0x4] sm:$0xf]
        %v259 = vld [vmem:[%s248 + $0x8] sm:$0xf]
        %v260 = vld [vmem:[%s248 + $0xc] sm:$0xf]
        %v261 = vld [vmem:[%s248 + $0x10] sm:$0xf]
        %v262 = vld [vmem:[%s248 + $0x14] sm:$0xf]
        %v263 = vld [vmem:[%s248 + $0x18] sm:$0xf]
        %v264 = vld [vmem:[%s248 + $0x1c] sm:$0xf]
        %v265 = vld [vmem:[%s1] sm:$0xf]
        %v266 = vld [vmem:[%s1 + $0x4] sm:$0xf]
        %v267 = vld [vmem:[%s1 + $0x8] sm:$0xf]
        %v268 = vld [vmem:[%s1 + $0xc] sm:$0xf]
        %v269 = vld [vmem:[%s2] sm:$0x1]
        %v271 = vlaneseq
        %v272 = vshrl.u32 %v271, 7
        %v273 = vsub.s32 0, %v272
        %v274 = vrot.slane %v269, %v273
        %v284 = vunpack.c.l.b16 %v257
        %v285 = vunpack.c.l.b16 %v258
        %v286 = vunpack.c.l.b16 %v259
        %v287 = vunpack.c.l.b16 %v260
        %v288 = vunpack.c.l.b16 %v261
        %v289 = vunpack.c.l.b16 %v262
        %v290 = vunpack.c.l.b16 %v263
        %v291 = vunpack.c.l.b16 %v264
        %v292 = vpack.c.b16 %v285, %v284
        %v293 = vpack.c.b16 %v287, %v286
        %v294 = vpack.c.b16 %v289, %v288
        %v295 = vpack.c.b16 %v291, %v290
        %v300 = vunpack.c.l.b16 %v265
        %v301 = vunpack.c.l.b16 %v266
        %v302 = vunpack.c.l.b16 %v267
        %v303 = vunpack.c.l.b16 %v268
        %v304 = vpack.c.b16 %v301, %v300
        %v305 = vpack.c.b16 %v303, %v302
        %vm308 = vcmask 261120
        %v310 = vsel %vm308, %v292, 0
        %v313 = vsel %vm308, %v293, 0
        %v316 = vsel %vm308, %v294, 0
        %v319 = vsel %vm308, %v295, 0
        %321 = vmatprep.subr.bf16.mxu0 0
        %322 = vmatpush1.bf16.msra.mxu0 %v304
        %323 = vmatprep.subr.bf16.mxu0 0
        %324 = vmatpush1.bf16.msra.mxu0 %v305
        %325 = vmatprep.subr.bf16.mxu0 0
        %326 = vmatpush1.bf16.msra.mxu0 0
        %327 = vmatprep.subr.bf16.mxu0 0
        %328 = vmatpush1.bf16.msra.mxu0 0
        %329 = vmatprep.subr.bf16.mxu0 0
        %330 = vmatpush1.bf16.msra.mxu0 0
        %331 = vmatprep.subr.bf16.mxu0 0
        %332 = vmatpush1.bf16.msra.mxu0 0
        %333 = vmatprep.subr.bf16.mxu0 0
        %334 = vmatpush1.bf16.msra.mxu0 0
        %335 = vmatprep.subr.bf16.mxu0 0
        %336 = vmatpush1.bf16.msra.mxu0 0
        %337 = vmatprep.subr.bf16.mxu0 0
        %338 = vmatpush1.bf16.msra.mxu0 0
        %339 = vmatprep.subr.bf16.mxu0 0
        %340 = vmatpush1.bf16.msra.mxu0 0
        %341 = vmatprep.subr.bf16.mxu0 0
        %342 = vmatpush1.bf16.msra.mxu0 0
        %343 = vmatprep.subr.bf16.mxu0 0
        %344 = vmatpush1.bf16.msra.mxu0 0
        %345 = vmatprep.subr.bf16.mxu0 0
        %346 = vmatpush1.bf16.msra.mxu0 0
        %347 = vmatprep.subr.bf16.mxu0 0
        %348 = vmatpush1.bf16.msra.mxu0 0
        %349 = vmatprep.subr.bf16.mxu0 0
        %350 = vmatpush1.bf16.msra.mxu0 0
        %351 = vmatprep.subr.bf16.mxu0 0
        %352 = vmatpush1.bf16.msra.mxu0 0
        %353 = vmatprep.mubr.bf16.mxu0 0
        %354 = vmatmul.mubr.bf16.gmra.mrb[0].mxu0 %v310
        %v355 = vpop.f32.mrb[0].mxu0
        %v356 = vadd.f32 %v274, %v355
        %v357 = vpop.f32.mrb[0].mxu0
        %v358 = vpop.f32.mrb[0].mxu0
        %v359 = vadd.f32 %v274, %v358
        %v360 = vpop.f32.mrb[0].mxu0
        %361 = vmatprep.mubr.bf16.mxu0 0
        %362 = vmatmul.mubr.bf16.gmra.mrb[0].mxu0 %v313
        %v363 = vpop.f32.mrb[0].mxu0
        %v364 = vadd.f32 %v274, %v363
        %v365 = vpop.f32.mrb[0].mxu0
        %v366 = vpop.f32.mrb[0].mxu0
        %v367 = vadd.f32 %v274, %v366
        %v368 = vpop.f32.mrb[0].mxu0
        %369 = vmatprep.mubr.bf16.mxu0 0
        %370 = vmatmul.mubr.bf16.gmra.mrb[0].mxu0 %v316
        %v371 = vpop.f32.mrb[0].mxu0
        %v372 = vadd.f32 %v274, %v371
        %v373 = vpop.f32.mrb[0].mxu0
        %v374 = vpop.f32.mrb[0].mxu0
        %v375 = vadd.f32 %v274, %v374
        %v376 = vpop.f32.mrb[0].mxu0
        %377 = vmatprep.mubr.bf16.mxu0 0
        %378 = vmatmul.mubr.bf16.gmra.mrb[0].mxu0 %v319
        %v379 = vpop.f32.mrb[0].mxu0
        %v380 = vadd.f32 %v274, %v379
        %v381 = vpop.f32.mrb[0].mxu0
        %v382 = vpop.f32.mrb[0].mxu0
        %v383 = vadd.f32 %v274, %v382
        %v384 = vpop.f32.mrb[0].mxu0
        %385 = vdwg.mxu0
        %v386 = vmax.f32 %v356, 0.0
        %v387 = vmax.f32 %v359, 0.0
        %v388 = vmax.f32 %v364, 0.0
        %v389 = vmax.f32 %v367, 0.0
        %v390 = vmax.f32 %v372, 0.0
        %v391 = vmax.f32 %v375, 0.0
        %v392 = vmax.f32 %v380, 0.0
        %v393 = vmax.f32 %v383, 0.0
        %v394 = vld [vmem:[#allocation2] sm:$0x1]
        %v395 = vsel %vm308, %v386, 0.0
        %v396 = vsel %vm308, %v387, 0.0
        %v397 = vadd.f32 %v395, %v396
        %v398 = vsel %vm308, %v388, 0.0
        %v399 = vadd.f32 %v397, %v398
        %v400 = vsel %vm308, %v389, 0.0
        %v401 = vadd.f32 %v399, %v400
        %v402 = vsel %vm308, %v390, 0.0
        %v403 = vadd.f32 %v401, %v402
        %v404 = vsel %vm308, %v391, 0.0
        %v405 = vadd.f32 %v403, %v404
        %v406 = vsel %vm308, %v392, 0.0
        %v407 = vadd.f32 %v405, %v406
        %v408 = vsel %vm308, %v393, 0.0
        %v409 = vadd.f32 %v407, %v408
        %v410 = vrot.slane %v409, 4
        %v411 = vadd.f32 %v409, %v410
        %v412 = vrot.slane %v411, 2
        %v413 = vadd.f32 %v411, %v412
        %v414 = vrot.slane %v413, 1
        %v415 = vadd.f32 %v413, %v414
        %v416 = vadd.f32 %v394, %v415
        %vm417 = vcmask 253952
        %418 = vst.msk [vmem:[#allocation2] sm:$0x1] %vm417, %v416
        // Predicated region
        $region45: #{tpu_custom_call.1} parent=39 // pred_check
          %p419 = pneg %p251
        $region46: #{tpu_custom_call.1} parent=39 // pred_check_branch
          %421 = sbr.rel (%p419) target = $region48
        $region47: #{tpu_custom_call.1} parent=39 // pred_region
          %v422 = vld [vmem:[#allocation2] sm:$0x1]
          %v423 = vpack.c.bf16 %v422, %v422
          %v424 = vld [vmem:[%s3] sm:$0xf]
          %v425 = vld [vmem:[%s3 + $0x4] sm:$0xf]
          %v426 = vld [vmem:[%s3 + $0x8] sm:$0xf]
          %v427 = vld [vmem:[%s3 + $0xc] sm:$0xf]
          %v428 = vld [vmem:[%s4] sm:$0x1]
          %v433 = vunpack.c.l.b16 %v424
          %v434 = vunpack.c.l.b16 %v425
          %v435 = vunpack.c.l.b16 %v426
          %v436 = vunpack.c.l.b16 %v427
          %v437 = vpack.c.b16 %v434, %v433
          %v438 = vpack.c.b16 %v436, %v435
          %v442 = vsel %vm308, %v423, 0
          %444 = vmatprep.subr.bf16.mxu0 0
          %445 = vmatpush1.bf16.msra.mxu0 %v437
          %446 = vmatprep.subr.bf16.mxu0 0
          %447 = vmatpush1.bf16.msra.mxu0 %v438
          %448 = vmatprep.subr.bf16.mxu0 0
          %449 = vmatpush1.bf16.msra.mxu0 0
          %450 = vmatprep.subr.bf16.mxu0 0
          %451 = vmatpush1.bf16.msra.mxu0 0
          %452 = vmatprep.subr.bf16.mxu0 0
          %453 = vmatpush1.bf16.msra.mxu0 0
          %454 = vmatprep.subr.bf16.mxu0 0
          %455 = vmatpush1.bf16.msra.mxu0 0
          %456 = vmatprep.subr.bf16.mxu0 0
          %457 = vmatpush1.bf16.msra.mxu0 0
          %458 = vmatprep.subr.bf16.mxu0 0
          %459 = vmatpush1.bf16.msra.mxu0 0
          %460 = vmatprep.subr.bf16.mxu0 0
          %461 = vmatpush1.bf16.msra.mxu0 0
          %462 = vmatprep.subr.bf16.mxu0 0
          %463 = vmatpush1.bf16.msra.mxu0 0
          %464 = vmatprep.subr.bf16.mxu0 0
          %465 = vmatpush1.bf16.msra.mxu0 0
          %466 = vmatprep.subr.bf16.mxu0 0
          %467 = vmatpush1.bf16.msra.mxu0 0
          %468 = vmatprep.subr.bf16.mxu0 0
          %469 = vmatpush1.bf16.msra.mxu0 0
          %470 = vmatprep.subr.bf16.mxu0 0
          %471 = vmatpush1.bf16.msra.mxu0 0
          %472 = vmatprep.subr.bf16.mxu0 0
          %473 = vmatpush1.bf16.msra.mxu0 0
          %474 = vmatprep.subr.bf16.mxu0 0
          %475 = vmatpush1.bf16.msra.mxu0 0
          %476 = vmatprep.mubr.bf16.mxu0 0
          %477 = vmatmul.mubr.bf16.gmra.mrb[0].mxu0 %v442
          %v478 = vpop.f32.mrb[0].mxu0
          %v479 = vadd.f32 %v428, %v478
          %v480 = vpop.f32.mrb[0].mxu0
          %v481 = vpop.f32.mrb[0].mxu0
          %v482 = vpop.f32.mrb[0].mxu0
          %483 = vdwg.mxu0
          %484 = vst [vmem:[%s239] sm:$0x1] %v479
        $region48: #{tpu_custom_call.1} parent=39 // pred_fallthru
          _
        %s485 = sand.u32 %s151, 1
        %s486 = scalar_lea.sflag [#allocation4], %s485
        %s487 = sand.u32 %s151, 1
        %s488 = scalar_lea.vmem [#allocation3], %s487
        // Predicated region
        $region49: #{tpu_custom_call.1} parent=39 // pred_check
          %p489 = pneg %p161
        $region50: #{tpu_custom_call.1} parent=39 // pred_check_branch
          %491 = sbr.rel (%p489) target = $region52
        $region51: #{tpu_custom_call.1} parent=39 // pred_region
          %s493 = ssub.s32 16, 16
          %494 = vsyncadd %s486, %s493
          %s495 = smul.addr %s23, 16
          %s496 = scalar_lea.hbm %s5, %s495
          %s498 = sshll.u32 %s488, 4
          %s499 = int_to_ptr.vmem [resolvable:$true] %s498
          %501 = dma.vmem_to_hbm [thread:$0]  %s499, 16, %s496, %s486
        $region52: #{tpu_custom_call.1} parent=39 // pred_fallthru
          _
      $region40: #{tpu_custom_call.1} parent=5 // pred_fallthru
        _
      %p502 = scmp.le.s32.totalorder 2, %s14
      // Predicated region
      $region53: #{tpu_custom_call.1} parent=5 // pred_check
        %p503 = pneg %p502
      $region54: #{tpu_custom_call.1} parent=5 // pred_check_branch
        %505 = sbr.rel (%p503) target = $region56
      $region55: #{tpu_custom_call.1} parent=5 // pred_region
        %s506 = ssub.s32 %s14, 2
        // Predicated region
        $region57: #{tpu_custom_call.1} parent=55 // pred_check
          %p507 = pneg %p167
        $region58: #{tpu_custom_call.1} parent=55 // pred_check_branch
          %509 = sbr.rel (%p507) target = $region60
        $region59: #{tpu_custom_call.1} parent=55 // pred_region
          %s510 = sand.u32 %s152, 1
          %s511 = scalar_lea.sflag [#allocation4], %s510
          %s512 = sand.u32 %s152, 1
          %s513 = scalar_lea.vmem [#allocation3], %s512
          %514 = dma.done %s511, 16
        $region60: #{tpu_custom_call.1} parent=55 // pred_fallthru
          _
      $region56: #{tpu_custom_call.1} parent=5 // pred_fallthru
        _
    $region6: #{tpu_custom_call.1} parent=1 // loop_footer
      %s18 = sadd.s32 1, %s14
    $region7: #{tpu_custom_call.1} parent=1 // loop_footer_branch
      %13 = sbr.rel target = $region3
    $region8: #{tpu_custom_call.1} parent=1 // loop_exit
      _
    %515 = vsyncpa [#allocation4], 1
    %s516 = scalar_lea.sflag [#allocation4], 1
    %517 = vsyncpa %s516, 1

</llo_original>
